<compile_context>
chip_gen: v7x
topology: tpu7x:2x2x1
jax: 0.10.0
libtpu: 0.0.40
codegen_flags: <defaults>
</compile_context>

<pallas_src>
import functools

import jax
import jax.numpy as jnp
from jax.experimental import pallas as pl
from jax.experimental.pallas import tpu as pltpu


def _round_up(x, m):
    return ((x + m - 1) // m) * m


# ---------------------------------------------------------------------------
# Kernel
# ---------------------------------------------------------------------------
def mlp_kernel(x_ref, w0_ref, b0_ref, w1_ref, b1_ref, w2_ref, b2_ref, o_ref):
    # Layer 0: Linear + ReLU   (MXU matmul in weight dtype, f32 accumulate,
    # f32 bias+ReLU epilogue on the VPU -> v5e-safe).
    h = jnp.dot(x_ref[...].astype(w0_ref.dtype), w0_ref[...],
                preferred_element_type=jnp.float32)
    h = jnp.maximum(h + b0_ref[...], 0.0)
    # Layer 1: Linear + ReLU
    h = jnp.dot(h.astype(w1_ref.dtype), w1_ref[...],
                preferred_element_type=jnp.float32)
    h = jnp.maximum(h + b1_ref[...], 0.0)
    # Output layer: Linear (no activation)
    out = jnp.dot(h.astype(w2_ref.dtype), w2_ref[...],
                  preferred_element_type=jnp.float32) + b2_ref[...]
    o_ref[...] = out.astype(o_ref.dtype)


# ---------------------------------------------------------------------------
# One-time parameter preparation (out of the per-call hot path)
# ---------------------------------------------------------------------------
def prepare_params(params, compute_dtype=jnp.bfloat16, lane=128):
    """PyTorch-layout (out, in) weights -> kernel layout:
       (in_pad, out_pad) weights in `compute_dtype`, zero-padded so out_pad is a
       multiple of `lane`; biases -> f32 (1, out_pad).
       Invariant: padded weight columns AND padded bias lanes are exactly zero,
       so padded output lanes are exactly zero and never perturb real lanes."""
    prepped = []
    prev_out_pad = None
    for i, (w, b) in enumerate(params):
        out_dim, in_dim = w.shape
        in_pad = in_dim if i == 0 else prev_out_pad
        out_pad = _round_up(out_dim, lane)
        wt = jnp.zeros((in_pad, out_pad), compute_dtype)
        wt = wt.at[:in_dim, :out_dim].set(w.T.astype(compute_dtype))
        bp = jnp.zeros((1, out_pad), jnp.float32)
        bp = bp.at[:, :out_dim].set(b.reshape(1, -1).astype(jnp.float32))
        prepped.append((wt, bp))
        prev_out_pad = out_pad
    return prepped


# ---------------------------------------------------------------------------
# Forward wrapper
# ---------------------------------------------------------------------------
@functools.partial(
    jax.jit,
    static_argnames=("n_out", "tile_b", "out_dtype", "min_pallas_batch",
                     "return_padded"))
def mlp_forward(x, prepped_params, n_out, tile_b=512, out_dtype=None,
                min_pallas_batch=512, return_padded=False):
    """x: (B, ...) flattened to (B, F) like PyTorch .view(-1, num_flat_features)."""
    B = x.shape[0]
    x2d = x.reshape(B, -1)
    F = x2d.shape[1]

    (w0, b0), (w1, b1), (w2, b2) = prepped_params
    h0, h1, n_out_pad = w0.shape[1], w1.shape[1], w2.shape[1]
    out_dt = jnp.dtype(out_dtype) if out_dtype is not None else jnp.dtype(w0.dtype)

    # Small-batch fallback: at tiny B wall time is pure launch + per-step
    # overhead; plain XLA (no 128-lane padding round trip) wins there.
    if B < min_pallas_batch:
        h = jnp.maximum(jnp.dot(x2d.astype(w0.dtype), w0,
                                preferred_element_type=jnp.float32) + b0, 0.0)
        h = jnp.maximum(jnp.dot(h.astype(w1.dtype), w1,
                                preferred_element_type=jnp.float32) + b1, 0.0)
        out = (jnp.dot(h.astype(w2.dtype), w2,
                       preferred_element_type=jnp.float32) + b2).astype(out_dt)
        return out if return_padded else out[:, :n_out]

    # ---- Pallas path -------------------------------------------------------
    # Batch tiling (no jnp.pad: ragged last tile handled by Pallas masking).
    tile_b = max(8, min(tile_b, _round_up(B, 8)))
    if B > 8:
        # Ensure >= 2 grid steps when possible so both v7x TensorCores get work.
        tile_b = min(tile_b, _round_up(pl.cdiv(B, 2), 8))
    grid_steps = pl.cdiv(B, tile_b)

    def resident(shape):
        # Constant block index + single buffer: DMA'd once, VMEM-resident.
        return pl.BlockSpec(shape, lambda i: (0, 0),
                            pipeline_mode=pl.Buffered(1))

    # Explicit VMEM budget from the actual tile footprint (+2x headroom,
    # floored at 16 MiB, capped well under any chip's physical VMEM).
    w_bytes = sum(int(w.size) * w.dtype.itemsize + int(b.size) * b.dtype.itemsize
                  for w, b in prepped_params)
    x_tile_bytes = 2 * tile_b * F * x2d.dtype.itemsize           # double-buffered
    out_tile_bytes = 2 * tile_b * n_out_pad * out_dt.itemsize    # double-buffered
    inter_bytes = 3 * tile_b * max(h0, h1, n_out_pad) * 4        # f32 intermediates
    vmem_limit = int(min(56 * 1024 * 1024,
                         max(16 * 1024 * 1024,
                             2 * (w_bytes + x_tile_bytes + out_tile_bytes
                                  + inter_bytes))))

    rows = grid_steps * tile_b
    cost = pl.CostEstimate(
        flops=2 * rows * (F * h0 + h0 * h1 + h1 * n_out_pad),
        transcendentals=0,
        bytes_accessed=int(B * F * x2d.dtype.itemsize + w_bytes
                           + B * n_out_pad * out_dt.itemsize),
    )

    out = pl.pallas_call(
        mlp_kernel,
        out_shape=jax.ShapeDtypeStruct((B, n_out_pad), out_dt),
        grid_spec=pltpu.PrefetchScalarGridSpec(
            num_scalar_prefetch=0,
            grid=(grid_steps,),
            in_specs=[
                pl.BlockSpec((tile_b, F), lambda i: (i, 0)),
                resident(w0.shape), resident(b0.shape),
                resident(w1.shape), resident(b1.shape),
                resident(w2.shape), resident(b2.shape),
            ],
            out_specs=pl.BlockSpec((tile_b, n_out_pad), lambda i: (i, 0)),
        ),
        compiler_params=pltpu.CompilerParams(
            dimension_semantics=("parallel",),   # megacore sharding on v7x
            vmem_limit_bytes=vmem_limit,
        ),
        cost_estimate=cost,
    )(x2d, w0, b0, w1, b1, w2, b2)

    # Padded lanes are exact zeros; slice only when the caller needs (B, n_out).
    return out if return_padded else out[:, :n_out]


# ---------------------------------------------------------------------------
# Init + reference (pure JAX)
# ---------------------------------------------------------------------------
def init_params(key, n_in, n_out, h_layers=(20, 20)):
    """Deterministic init mirroring nn.Linear's U(-1/sqrt(fan_in), 1/sqrt(fan_in))."""
    dims = [n_in] + list(h_layers) + [n_out]
    params = []
    for i in range(len(dims) - 1):
        fan_in, fan_out = dims[i], dims[i + 1]
        key, kw, kb = jax.random.split(key, 3)
        bound = 1.0 / jnp.sqrt(fan_in)
        w = jax.random.uniform(kw, (fan_out, fan_in), jnp.float32, -bound, bound)
        b = jax.random.uniform(kb, (fan_out,), jnp.float32, -bound, bound)
        params.append((w, b))
    return params


def mlp_reference(x, params):
    B = x.shape[0]
    h = x.reshape(B, -1)
    for i, (w, b) in enumerate(params):
        h = h @ w.T + b
        if i < len(params) - 1:
            h = jnp.maximum(h, 0.0)
    return h


# ---------------------------------------------------------------------------
if __name__ == "__main__":
    key = jax.random.PRNGKey(0)
    k_x, k_x2, k_p = jax.random.split(key, 3)

    # Input: (batch=2, 4, 8) -> flattened to (2, 32); n_in=32, hidden=(20,20), n_out=10
    n_in, n_out = 4 * 8, 10
    x = jax.random.normal(k_x, (2, 4, 8), dtype=jnp.float32)
    params = init_params(k_p, n_in, n_out, h_layers=(20, 20))
    y_ref = mlp_reference(x, params)

    # 1) Exactness check through the Pallas kernel: f32 weights + f32 output.
    params_f32 = prepare_params(params, compute_dtype=jnp.float32)
    y_f32 = mlp_forward(x, params_f32, n_out, min_pallas_batch=0,
                        out_dtype=jnp.float32)
    jax.block_until_ready(y_f32)
    assert y_f32.shape == (2, n_out)
    assert jnp.allclose(y_f32, y_ref, atol=1e-5, rtol=1e-5)

    # 2) Production config through the Pallas kernel: bf16 MXU matmuls,
    #    f32 accumulation, bf16 output (looser tolerance).
    params_bf16 = prepare_params(params, compute_dtype=jnp.bfloat16)
    y_bf16 = mlp_forward(x, params_bf16, n_out, min_pallas_batch=0)
    jax.block_until_ready(y_bf16)
    assert y_bf16.shape == (2, n_out)
    assert jnp.allclose(y_bf16.astype(jnp.float32), y_ref, atol=3e-2, rtol=3e-2)

    # 3) Multi-step grid with a ragged last tile (B=90 -> 2 grid steps, last
    #    tile partial) to exercise Pallas masking + VMEM-resident weights.
    xb = jax.random.normal(k_x2, (90, 4, 8), dtype=jnp.float32)
    yb_ref = mlp_reference(xb, params)
    yb = mlp_forward(xb, params_bf16, n_out, min_pallas_batch=0)
    jax.block_until_ready(yb)
    assert yb.shape == (90, n_out)
    assert jnp.allclose(yb.astype(jnp.float32), yb_ref, atol=3e-2, rtol=3e-2)

    # 4) Default dispatch (small batch -> XLA fallback path) still matches.
    y_fb = mlp_forward(x, params_bf16, n_out)
    jax.block_until_ready(y_fb)
    assert y_fb.shape == (2, n_out)
    assert jnp.allclose(y_fb.astype(jnp.float32), y_ref, atol=3e-2, rtol=3e-2)

    print("KERNEL_OK")
</pallas_src>

<mosaic_0001>
module attributes {stable_mosaic.version = 11 : i64} {
  func.func @mlp_kernel(%arg0: i32, %arg1: memref<8x32xf32, #tpu.memory_space<vmem>>, %arg2: memref<32x128xf32, #tpu.memory_space<vmem>>, %arg3: memref<1x128xf32, #tpu.memory_space<vmem>>, %arg4: memref<128x128xf32, #tpu.memory_space<vmem>>, %arg5: memref<1x128xf32, #tpu.memory_space<vmem>>, %arg6: memref<128x128xf32, #tpu.memory_space<vmem>>, %arg7: memref<1x128xf32, #tpu.memory_space<vmem>>, %arg8: memref<8x128xf32, #tpu.memory_space<vmem>>) attributes {dimension_semantics = [#tpu.dimension_semantics<parallel>], iteration_bounds = array<i64: 1>, scalar_prefetch = 0 : i64, scratch_operands = 0 : i64, tpu.core_type = #tpu.core_type<tc>, window_params = [{transform_indices = @transform_0, window_bounds = array<i64: 8, 32>}, {pipeline_mode = #tpu.pipeline_mode<synchronous>, transform_indices = @transform_1, window_bounds = array<i64: 32, 128>}, {pipeline_mode = #tpu.pipeline_mode<synchronous>, transform_indices = @transform_2, window_bounds = array<i64: 1, 128>}, {pipeline_mode = #tpu.pipeline_mode<synchronous>, transform_indices = @transform_3, window_bounds = array<i64: 128, 128>}, {pipeline_mode = #tpu.pipeline_mode<synchronous>, transform_indices = @transform_4, window_bounds = array<i64: 1, 128>}, {pipeline_mode = #tpu.pipeline_mode<synchronous>, transform_indices = @transform_5, window_bounds = array<i64: 128, 128>}, {pipeline_mode = #tpu.pipeline_mode<synchronous>, transform_indices = @transform_6, window_bounds = array<i64: 1, 128>}, {transform_indices = @transform_7, window_bounds = array<i64: 8, 128>}]} {
    %c0 = arith.constant 0 : index
    %c0_0 = arith.constant 0 : index
    %0 = vector.load %arg1[%c0, %c0_0] : memref<8x32xf32, #tpu.memory_space<vmem>>, vector<8x32xf32>
    %c0_1 = arith.constant 0 : index
    %c0_2 = arith.constant 0 : index
    %1 = vector.load %arg2[%c0_1, %c0_2] : memref<32x128xf32, #tpu.memory_space<vmem>>, vector<32x128xf32>
    %cst = arith.constant dense<0.000000e+00> : vector<8x128xf32>
    %2 = tpu.matmul %0, %1, %cst {dimension_numbers = #tpu.dot_dimension_numbers<[1], [0], [0], [1], [0, 0, 1, 1], [], []>} : vector<8x32xf32>, vector<32x128xf32>, vector<8x128xf32> -> vector<8x128xf32>
    %c0_3 = arith.constant 0 : index
    %c0_4 = arith.constant 0 : index
    %3 = vector.load %arg3[%c0_3, %c0_4] : memref<1x128xf32, #tpu.memory_space<vmem>>, vector<1x128xf32>
    %4 = vector.broadcast %3 : vector<1x128xf32> to vector<8x128xf32>
    %5 = arith.addf %2, %4 : vector<8x128xf32>
    %cst_5 = arith.constant 0.000000e+00 : f32
    %6 = vector.broadcast %cst_5 : f32 to vector<8x128xf32>
    %7 = arith.maximumf %5, %6 : vector<8x128xf32>
    %c0_6 = arith.constant 0 : index
    %c0_7 = arith.constant 0 : index
    %8 = vector.load %arg4[%c0_6, %c0_7] : memref<128x128xf32, #tpu.memory_space<vmem>>, vector<128x128xf32>
    %cst_8 = arith.constant dense<0.000000e+00> : vector<8x128xf32>
    %9 = tpu.matmul %7, %8, %cst_8 {dimension_numbers = #tpu.dot_dimension_numbers<[1], [0], [0], [1], [0, 0, 1, 1], [], []>} : vector<8x128xf32>, vector<128x128xf32>, vector<8x128xf32> -> vector<8x128xf32>
    %c0_9 = arith.constant 0 : index
    %c0_10 = arith.constant 0 : index
    %10 = vector.load %arg5[%c0_9, %c0_10] : memref<1x128xf32, #tpu.memory_space<vmem>>, vector<1x128xf32>
    %11 = vector.broadcast %10 : vector<1x128xf32> to vector<8x128xf32>
    %12 = arith.addf %9, %11 : vector<8x128xf32>
    %cst_11 = arith.constant 0.000000e+00 : f32
    %13 = vector.broadcast %cst_11 : f32 to vector<8x128xf32>
    %14 = arith.maximumf %12, %13 : vector<8x128xf32>
    %c0_12 = arith.constant 0 : index
    %c0_13 = arith.constant 0 : index
    %15 = vector.load %arg6[%c0_12, %c0_13] : memref<128x128xf32, #tpu.memory_space<vmem>>, vector<128x128xf32>
    %cst_14 = arith.constant dense<0.000000e+00> : vector<8x128xf32>
    %16 = tpu.matmul %14, %15, %cst_14 {dimension_numbers = #tpu.dot_dimension_numbers<[1], [0], [0], [1], [0, 0, 1, 1], [], []>} : vector<8x128xf32>, vector<128x128xf32>, vector<8x128xf32> -> vector<8x128xf32>
    %c0_15 = arith.constant 0 : index
    %c0_16 = arith.constant 0 : index
    %17 = vector.load %arg7[%c0_15, %c0_16] : memref<1x128xf32, #tpu.memory_space<vmem>>, vector<1x128xf32>
    %18 = vector.broadcast %17 : vector<1x128xf32> to vector<8x128xf32>
    %19 = arith.addf %16, %18 : vector<8x128xf32>
    %c0_17 = arith.constant 0 : index
    %c0_18 = arith.constant 0 : index
    %20 = vector.load %arg8[%c0_17, %c0_18] : memref<8x128xf32, #tpu.memory_space<vmem>>, vector<8x128xf32>
    tpu.vector_store %arg8[%c0_17, %c0_18], %19 {strides = array<i32>} : memref<8x128xf32, #tpu.memory_space<vmem>>, vector<8x128xf32>,
    return
  }
  func.func @transform_0(%arg0: i32) -> (i32, i32) {
    %c0_i32 = arith.constant 0 : i32
    %c0_i32_0 = arith.constant 0 : i32
    return %arg0, %c0_i32 : i32, i32
  }
  func.func @transform_1(%arg0: i32) -> (i32, i32) {
    %c0_i32 = arith.constant 0 : i32
    %c0_i32_0 = arith.constant 0 : i32
    %c0_i32_1 = arith.constant 0 : i32
    return %c0_i32, %c0_i32_0 : i32, i32
  }
  func.func @transform_2(%arg0: i32) -> (i32, i32) {
    %c0_i32 = arith.constant 0 : i32
    %c0_i32_0 = arith.constant 0 : i32
    %c0_i32_1 = arith.constant 0 : i32
    return %c0_i32, %c0_i32_0 : i32, i32
  }
  func.func @transform_3(%arg0: i32) -> (i32, i32) {
    %c0_i32 = arith.constant 0 : i32
    %c0_i32_0 = arith.constant 0 : i32
    %c0_i32_1 = arith.constant 0 : i32
    return %c0_i32, %c0_i32_0 : i32, i32
  }
  func.func @transform_4(%arg0: i32) -> (i32, i32) {
    %c0_i32 = arith.constant 0 : i32
    %c0_i32_0 = arith.constant 0 : i32
    %c0_i32_1 = arith.constant 0 : i32
    return %c0_i32, %c0_i32_0 : i32, i32
  }
  func.func @transform_5(%arg0: i32) -> (i32, i32) {
    %c0_i32 = arith.constant 0 : i32
    %c0_i32_0 = arith.constant 0 : i32
    %c0_i32_1 = arith.constant 0 : i32
    return %c0_i32, %c0_i32_0 : i32, i32
  }
  func.func @transform_6(%arg0: i32) -> (i32, i32) {
    %c0_i32 = arith.constant 0 : i32
    %c0_i32_0 = arith.constant 0 : i32
    %c0_i32_1 = arith.constant 0 : i32
    return %c0_i32, %c0_i32_0 : i32, i32
  }
  func.func @transform_7(%arg0: i32) -> (i32, i32) {
    %c0_i32 = arith.constant 0 : i32
    %c0_i32_0 = arith.constant 0 : i32
    return %arg0, %c0_i32 : i32, i32
  }
}

</mosaic_0001>

<llo_original>
// kernel: mlp_forward.1
$region0: #{mlp_forward.1}
  #allocation0 [shape = 'u32[]', space=smem, size = 0x4, offset = 0x4, fixed_abs, tag = 'smem constant byte address 0x4 - core index']
  #allocation1 [shape = 'u32[144,128]{1,0:T(1,128)}', space=vmem, size = 0x12000, scoped, tag = 'internal scratch']
  %s0 = inlined_call_operand.vmem [shape: f32[2,32], index: 0, kind: input, shape index: {}]
  %s1 = inlined_call_operand.hbm [shape: f32[32,128], index: 1, kind: input, shape index: {}]
  %s2 = inlined_call_operand.vmem [shape: f32[1,128], index: 2, kind: input, shape index: {}]
  %s3 = inlined_call_operand.hbm [shape: f32[128,128], index: 3, kind: input, shape index: {}]
  %s4 = inlined_call_operand.vmem [shape: f32[1,128], index: 4, kind: input, shape index: {}]
  %s5 = inlined_call_operand.hbm [shape: f32[128,128], index: 5, kind: input, shape index: {}]
  %s6 = inlined_call_operand.vmem [shape: f32[1,128], index: 6, kind: input, shape index: {}]
  %s7 = inlined_call_operand.hbm [shape: f32[2,128], index: 7, kind: output, shape index: {}]
  %s8 = sld [smem:[#allocation0]]
  $region50: #{mlp_forward.1} parent=0
    _
  %s10 = ssub.s32 1, %s8
  %s11 = scalar_select 0, %s10, %s8
  $region1: #{mlp_forward.1} parent=0
    #allocation2 [shape = 'u8[16384]{0}', space=vmem, size = 0x4000, scoped, tag = 'input window, operand 1, single buffered']
    #allocation3 [shape = 's32[1]{0}', space=sflag, size = 0x4, scoped, tag = 'scoped memory for mlp_forward.1']
    #allocation4 [shape = 's32[1]{0}', space=sflag, size = 0x4, scoped, tag = 'scoped memory for mlp_forward.1']
    #allocation5 [shape = 'u8[65536]{0}', space=vmem, size = 0x10000, scoped, tag = 'input window, operand 3, single buffered']
    #allocation6 [shape = 's32[1]{0}', space=sflag, size = 0x4, scoped, tag = 'scoped memory for mlp_forward.1']
    #allocation7 [shape = 'u8[65536]{0}', space=vmem, size = 0x10000, scoped, tag = 'input window, operand 5, single buffered']
    #allocation8 [shape = 'u8[4096]{0}', space=vmem, size = 0x1000, scoped, tag = 'output window, operand 0, single buffered']
    %12 = vsyncpa [#allocation3], 0
    %13 = vsyncpa [#allocation6], 0
    %14 = vsyncpa [#allocation4], 0
    // Predicated region
    $region2: #{mlp_forward.1} parent=1 // pred_check
      _
    $region3: #{mlp_forward.1} parent=1 // pred_check_branch
      %16 = sbr.rel (0) target = $region5
    $region4: #{mlp_forward.1} parent=1 // pred_region
      _
    $region5: #{mlp_forward.1} parent=1 // pred_fallthru
      _
    // Predicated region
    $region6: #{mlp_forward.1} parent=1 // pred_check
      _
    $region7: #{mlp_forward.1} parent=1 // pred_check_branch
      %18 = sbr.rel (0) target = $region9
    $region8: #{mlp_forward.1} parent=1 // pred_region
      %s20 = ssub.s32 512, 512
      %21 = vsyncadd [#allocation3], %s20
      %s22 = sshll.u32 [#allocation2], 4
      %s23 = int_to_ptr.vmem [resolvable:$true] %s22
      %28 = dma.hbm_to_vmem [thread:$0]  %s1, 512, %s23, [#allocation3], 128, 128, 8
    $region9: #{mlp_forward.1} parent=1 // pred_fallthru
      _
    // Predicated region
    $region10: #{mlp_forward.1} parent=1 // pred_check
      _
    $region11: #{mlp_forward.1} parent=1 // pred_check_branch
      %30 = sbr.rel (0) target = $region13
    $region12: #{mlp_forward.1} parent=1 // pred_region
      _
    $region13: #{mlp_forward.1} parent=1 // pred_fallthru
      _
    // Predicated region
    $region14: #{mlp_forward.1} parent=1 // pred_check
      _
    $region15: #{mlp_forward.1} parent=1 // pred_check_branch
      %32 = sbr.rel (0) target = $region17
    $region16: #{mlp_forward.1} parent=1 // pred_region
      %s34 = ssub.s32 2048, 2048
      %35 = vsyncadd [#allocation6], %s34
      %s36 = sshll.u32 [#allocation5], 4
      %s37 = int_to_ptr.vmem [resolvable:$true] %s36
      %42 = dma.hbm_to_vmem [thread:$0]  %s3, 2048, %s37, [#allocation6], 128, 128, 8
    $region17: #{mlp_forward.1} parent=1 // pred_fallthru
      _
    // Predicated region
    $region18: #{mlp_forward.1} parent=1 // pred_check
      _
    $region19: #{mlp_forward.1} parent=1 // pred_check_branch
      %44 = sbr.rel (0) target = $region21
    $region20: #{mlp_forward.1} parent=1 // pred_region
      _
    $region21: #{mlp_forward.1} parent=1 // pred_fallthru
      _
    // Predicated region
    $region22: #{mlp_forward.1} parent=1 // pred_check
      _
    $region23: #{mlp_forward.1} parent=1 // pred_check_branch
      %46 = sbr.rel (0) target = $region25
    $region24: #{mlp_forward.1} parent=1 // pred_region
      %s48 = ssub.s32 2048, 2048
      %49 = vsyncadd [#allocation6], %s48
      %s50 = sshll.u32 [#allocation7], 4
      %s51 = int_to_ptr.vmem [resolvable:$true] %s50
      %56 = dma.hbm_to_vmem [thread:$0]  %s5, 2048, %s51, [#allocation6], 128, 128, 8
    $region25: #{mlp_forward.1} parent=1 // pred_fallthru
      _
    // Predicated region
    $region26: #{mlp_forward.1} parent=1 // pred_check
      _
    $region27: #{mlp_forward.1} parent=1 // pred_check_branch
      %58 = sbr.rel (0) target = $region29
    $region28: #{mlp_forward.1} parent=1 // pred_region
      _
    $region29: #{mlp_forward.1} parent=1 // pred_fallthru
      _
    // Predicated region
    $region30: #{mlp_forward.1} parent=1 // pred_check
      _
    $region31: #{mlp_forward.1} parent=1 // pred_check_branch
      %60 = sbr.rel (0) target = $region33
    $region32: #{mlp_forward.1} parent=1 // pred_region
      %61 = dma.done [#allocation3], 512
    $region33: #{mlp_forward.1} parent=1 // pred_fallthru
      _
    // Predicated region
    $region34: #{mlp_forward.1} parent=1 // pred_check
      _
    $region35: #{mlp_forward.1} parent=1 // pred_check_branch
      %63 = sbr.rel (0) target = $region37
    $region36: #{mlp_forward.1} parent=1 // pred_region
      %64 = dma.done [#allocation6], 2048
    $region37: #{mlp_forward.1} parent=1 // pred_fallthru
      _
    // Predicated region
    $region38: #{mlp_forward.1} parent=1 // pred_check
      _
    $region39: #{mlp_forward.1} parent=1 // pred_check_branch
      %66 = sbr.rel (0) target = $region41
    $region40: #{mlp_forward.1} parent=1 // pred_region
      %67 = dma.done [#allocation6], 2048
    $region41: #{mlp_forward.1} parent=1 // pred_fallthru
      _
    %v68 = vld [vmem:[%s0] sm:$0xff]
    %v69 = vld [vmem:[#allocation2] sm:$0xff]
    %v70 = vld [vmem:[#allocation2 + $0x8] sm:$0xff]
    %v71 = vld [vmem:[#allocation2 + $0x10] sm:$0xff]
    %v72 = vld [vmem:[#allocation2 + $0x18] sm:$0xff]
    %v73 = vld [vmem:[%s2] sm:$0x1]
    %v75 = vlaneseq
    %v76 = vshrl.u32 %v75, 7
    %v77 = vsub.s32 0, %v76
    %v78 = vrot.slane %v73, %v77
    %vm80 = vcmask 261120
    %v82 = vsel %vm80, %v68, 0
    %84 = vmatprep.subr.mxu0 0.0
    %85 = vmatpush1.msra.mxu0 %v69
    %86 = vmatprep.subr.mxu0 0.0
    %87 = vmatpush1.msra.mxu0 %v70
    %88 = vmatprep.subr.mxu0 0.0
    %89 = vmatpush1.msra.mxu0 %v71
    %90 = vmatprep.subr.mxu0 0.0
    %91 = vmatpush1.msra.mxu0 %v72
    %92 = vmatprep.subr.mxu0 0.0
    %93 = vmatpush1.msra.mxu0 0.0
    %94 = vmatprep.subr.mxu0 0.0
    %95 = vmatpush1.msra.mxu0 0.0
    %96 = vmatprep.subr.mxu0 0.0
    %97 = vmatpush1.msra.mxu0 0.0
    %98 = vmatprep.subr.mxu0 0.0
    %99 = vmatpush1.msra.mxu0 0.0
    %100 = vmatprep.subr.mxu0 0.0
    %101 = vmatpush1.msra.mxu0 0.0
    %102 = vmatprep.subr.mxu0 0.0
    %103 = vmatpush1.msra.mxu0 0.0
    %104 = vmatprep.subr.mxu0 0.0
    %105 = vmatpush1.msra.mxu0 0.0
    %106 = vmatprep.subr.mxu0 0.0
    %107 = vmatpush1.msra.mxu0 0.0
    %108 = vmatprep.subr.mxu0 0.0
    %109 = vmatpush1.msra.mxu0 0.0
    %110 = vmatprep.subr.mxu0 0.0
    %111 = vmatpush1.msra.mxu0 0.0
    %112 = vmatprep.subr.mxu0 0.0
    %113 = vmatpush1.msra.mxu0 0.0
    %114 = vmatprep.subr.mxu0 0.0
    %115 = vmatpush1.msra.mxu0 0.0
    %116 = vmatprep.subr.mxu0 0.0
    %117 = vmatpush1.msra.mxu0 0.0
    %118 = vmatprep.subr.mxu0 0.0
    %119 = vmatpush1.msra.mxu0 0.0
    %120 = vmatprep.subr.mxu0 0.0
    %121 = vmatpush1.msra.mxu0 0.0
    %122 = vmatprep.subr.mxu0 0.0
    %123 = vmatpush1.msra.mxu0 0.0
    %124 = vmatprep.subr.mxu0 0.0
    %125 = vmatpush1.msra.mxu0 0.0
    %126 = vmatprep.subr.mxu0 0.0
    %127 = vmatpush1.msra.mxu0 0.0
    %128 = vmatprep.subr.mxu0 0.0
    %129 = vmatpush1.msra.mxu0 0.0
    %130 = vmatprep.subr.mxu0 0.0
    %131 = vmatpush1.msra.mxu0 0.0
    %132 = vmatprep.subr.mxu0 0.0
    %133 = vmatpush1.msra.mxu0 0.0
    %134 = vmatprep.subr.mxu0 0.0
    %135 = vmatpush1.msra.mxu0 0.0
    %136 = vmatprep.subr.mxu0 0.0
    %137 = vmatpush1.msra.mxu0 0.0
    %138 = vmatprep.subr.mxu0 0.0
    %139 = vmatpush1.msra.mxu0 0.0
    %140 = vmatprep.subr.mxu0 0.0
    %141 = vmatpush1.msra.mxu0 0.0
    %142 = vmatprep.subr.mxu0 0.0
    %143 = vmatpush1.msra.mxu0 0.0
    %144 = vmatprep.subr.mxu0 0.0
    %145 = vmatpush1.msra.mxu0 0.0
    %146 = vmatprep.subr.mxu0 0.0
    %147 = vmatpush1.msra.mxu0 0.0
    %148 = vmatprep.mubr.f32.mxu0 0.0
    %149 = vmatmul.mubr.f32.gmra.mrb[0].mxu0 %v82
    %v150 = vpop.f32.mrb[0].mxu0
    %v151 = vadd.f32 %v78, %v150
    %v152 = vpop.f32.mrb[0].mxu0
    %153 = vdwg.mxu0
    %v154 = vmax.f32 %v151, 0.0
    %v155 = vld [vmem:[#allocation5] sm:$0xff]
    %v156 = vld [vmem:[#allocation5 + $0x8] sm:$0xff]
    %v157 = vld [vmem:[#allocation5 + $0x10] sm:$0xff]
    %v158 = vld [vmem:[#allocation5 + $0x18] sm:$0xff]
    %v159 = vld [vmem:[#allocation5 + $0x20] sm:$0xff]
    %v160 = vld [vmem:[#allocation5 + $0x28] sm:$0xff]
    %v161 = vld [vmem:[#allocation5 + $0x30] sm:$0xff]
    %v162 = vld [vmem:[#allocation5 + $0x38] sm:$0xff]
    %v163 = vld [vmem:[#allocation5 + $0x40] sm:$0xff]
    %v164 = vld [vmem:[#allocation5 + $0x48] sm:$0xff]
    %v165 = vld [vmem:[#allocation5 + $0x50] sm:$0xff]
    %v166 = vld [vmem:[#allocation5 + $0x58] sm:$0xff]
    %v167 = vld [vmem:[#allocation5 + $0x60] sm:$0xff]
    %v168 = vld [vmem:[#allocation5 + $0x68] sm:$0xff]
    %v169 = vld [vmem:[#allocation5 + $0x70] sm:$0xff]
    %v170 = vld [vmem:[#allocation5 + $0x78] sm:$0xff]
    %v171 = vld [vmem:[%s4] sm:$0x1]
    %v173 = vlaneseq
    %v174 = vshrl.u32 %v173, 7
    %v175 = vsub.s32 0, %v174
    %v176 = vrot.slane %v171, %v175
    %178 = vmatprep.subr.mxu0 0.0
    %179 = vmatpush1.msra.mxu0 %v155
    %180 = vmatprep.subr.mxu0 0.0
    %181 = vmatpush1.msra.mxu0 %v156
    %182 = vmatprep.subr.mxu0 0.0
    %183 = vmatpush1.msra.mxu0 %v157
    %184 = vmatprep.subr.mxu0 0.0
    %185 = vmatpush1.msra.mxu0 %v158
    %186 = vmatprep.subr.mxu0 0.0
    %187 = vmatpush1.msra.mxu0 %v159
    %188 = vmatprep.subr.mxu0 0.0
    %189 = vmatpush1.msra.mxu0 %v160
    %190 = vmatprep.subr.mxu0 0.0
    %191 = vmatpush1.msra.mxu0 %v161
    %192 = vmatprep.subr.mxu0 0.0
    %193 = vmatpush1.msra.mxu0 %v162
    %194 = vmatprep.subr.mxu0 0.0
    %195 = vmatpush1.msra.mxu0 %v163
    %196 = vmatprep.subr.mxu0 0.0
    %197 = vmatpush1.msra.mxu0 %v164
    %198 = vmatprep.subr.mxu0 0.0
    %199 = vmatpush1.msra.mxu0 %v165
    %200 = vmatprep.subr.mxu0 0.0
    %201 = vmatpush1.msra.mxu0 %v166
    %202 = vmatprep.subr.mxu0 0.0
    %203 = vmatpush1.msra.mxu0 %v167
    %204 = vmatprep.subr.mxu0 0.0
    %205 = vmatpush1.msra.mxu0 %v168
    %206 = vmatprep.subr.mxu0 0.0
    %207 = vmatpush1.msra.mxu0 %v169
    %208 = vmatprep.subr.mxu0 0.0
    %209 = vmatpush1.msra.mxu0 %v170
    %210 = vmatprep.subr.mxu0 0.0
    %211 = vmatpush1.msra.mxu0 0.0
    %212 = vmatprep.subr.mxu0 0.0
    %213 = vmatpush1.msra.mxu0 0.0
    %214 = vmatprep.subr.mxu0 0.0
    %215 = vmatpush1.msra.mxu0 0.0
    %216 = vmatprep.subr.mxu0 0.0
    %217 = vmatpush1.msra.mxu0 0.0
    %218 = vmatprep.subr.mxu0 0.0
    %219 = vmatpush1.msra.mxu0 0.0
    %220 = vmatprep.subr.mxu0 0.0
    %221 = vmatpush1.msra.mxu0 0.0
    %222 = vmatprep.subr.mxu0 0.0
    %223 = vmatpush1.msra.mxu0 0.0
    %224 = vmatprep.subr.mxu0 0.0
    %225 = vmatpush1.msra.mxu0 0.0
    %226 = vmatprep.subr.mxu0 0.0
    %227 = vmatpush1.msra.mxu0 0.0
    %228 = vmatprep.subr.mxu0 0.0
    %229 = vmatpush1.msra.mxu0 0.0
    %230 = vmatprep.subr.mxu0 0.0
    %231 = vmatpush1.msra.mxu0 0.0
    %232 = vmatprep.subr.mxu0 0.0
    %233 = vmatpush1.msra.mxu0 0.0
    %234 = vmatprep.subr.mxu0 0.0
    %235 = vmatpush1.msra.mxu0 0.0
    %236 = vmatprep.subr.mxu0 0.0
    %237 = vmatpush1.msra.mxu0 0.0
    %238 = vmatprep.subr.mxu0 0.0
    %239 = vmatpush1.msra.mxu0 0.0
    %240 = vmatprep.subr.mxu0 0.0
    %241 = vmatpush1.msra.mxu0 0.0
    %242 = vmatprep.mubr.f32.mxu0 0.0
    %243 = vmatmul.mubr.f32.gmra.mrb[0].mxu0 %v154
    %v244 = vpop.f32.mrb[0].mxu0
    %v245 = vadd.f32 %v176, %v244
    %v246 = vpop.f32.mrb[0].mxu0
    %247 = vdwg.mxu0
    %v248 = vmax.f32 %v245, 0.0
    %v249 = vld [vmem:[#allocation7] sm:$0xff]
    %v250 = vld [vmem:[#allocation7 + $0x8] sm:$0xff]
    %v251 = vld [vmem:[#allocation7 + $0x10] sm:$0xff]
    %v252 = vld [vmem:[#allocation7 + $0x18] sm:$0xff]
    %v253 = vld [vmem:[#allocation7 + $0x20] sm:$0xff]
    %v254 = vld [vmem:[#allocation7 + $0x28] sm:$0xff]
    %v255 = vld [vmem:[#allocation7 + $0x30] sm:$0xff]
    %v256 = vld [vmem:[#allocation7 + $0x38] sm:$0xff]
    %v257 = vld [vmem:[#allocation7 + $0x40] sm:$0xff]
    %v258 = vld [vmem:[#allocation7 + $0x48] sm:$0xff]
    %v259 = vld [vmem:[#allocation7 + $0x50] sm:$0xff]
    %v260 = vld [vmem:[#allocation7 + $0x58] sm:$0xff]
    %v261 = vld [vmem:[#allocation7 + $0x60] sm:$0xff]
    %v262 = vld [vmem:[#allocation7 + $0x68] sm:$0xff]
    %v263 = vld [vmem:[#allocation7 + $0x70] sm:$0xff]
    %v264 = vld [vmem:[#allocation7 + $0x78] sm:$0xff]
    %v265 = vld [vmem:[%s6] sm:$0x1]
    %v267 = vlaneseq
    %v268 = vshrl.u32 %v267, 7
    %v269 = vsub.s32 0, %v268
    %v270 = vrot.slane %v265, %v269
    %272 = vmatprep.subr.mxu0 0.0
    %273 = vmatpush1.msra.mxu0 %v249
    %274 = vmatprep.subr.mxu0 0.0
    %275 = vmatpush1.msra.mxu0 %v250
    %276 = vmatprep.subr.mxu0 0.0
    %277 = vmatpush1.msra.mxu0 %v251
    %278 = vmatprep.subr.mxu0 0.0
    %279 = vmatpush1.msra.mxu0 %v252
    %280 = vmatprep.subr.mxu0 0.0
    %281 = vmatpush1.msra.mxu0 %v253
    %282 = vmatprep.subr.mxu0 0.0
    %283 = vmatpush1.msra.mxu0 %v254
    %284 = vmatprep.subr.mxu0 0.0
    %285 = vmatpush1.msra.mxu0 %v255
    %286 = vmatprep.subr.mxu0 0.0
    %287 = vmatpush1.msra.mxu0 %v256
    %288 = vmatprep.subr.mxu0 0.0
    %289 = vmatpush1.msra.mxu0 %v257
    %290 = vmatprep.subr.mxu0 0.0
    %291 = vmatpush1.msra.mxu0 %v258
    %292 = vmatprep.subr.mxu0 0.0
    %293 = vmatpush1.msra.mxu0 %v259
    %294 = vmatprep.subr.mxu0 0.0
    %295 = vmatpush1.msra.mxu0 %v260
    %296 = vmatprep.subr.mxu0 0.0
    %297 = vmatpush1.msra.mxu0 %v261
    %298 = vmatprep.subr.mxu0 0.0
    %299 = vmatpush1.msra.mxu0 %v262
    %300 = vmatprep.subr.mxu0 0.0
    %301 = vmatpush1.msra.mxu0 %v263
    %302 = vmatprep.subr.mxu0 0.0
    %303 = vmatpush1.msra.mxu0 %v264
    %304 = vmatprep.subr.mxu0 0.0
    %305 = vmatpush1.msra.mxu0 0.0
    %306 = vmatprep.subr.mxu0 0.0
    %307 = vmatpush1.msra.mxu0 0.0
    %308 = vmatprep.subr.mxu0 0.0
    %309 = vmatpush1.msra.mxu0 0.0
    %310 = vmatprep.subr.mxu0 0.0
    %311 = vmatpush1.msra.mxu0 0.0
    %312 = vmatprep.subr.mxu0 0.0
    %313 = vmatpush1.msra.mxu0 0.0
    %314 = vmatprep.subr.mxu0 0.0
    %315 = vmatpush1.msra.mxu0 0.0
    %316 = vmatprep.subr.mxu0 0.0
    %317 = vmatpush1.msra.mxu0 0.0
    %318 = vmatprep.subr.mxu0 0.0
    %319 = vmatpush1.msra.mxu0 0.0
    %320 = vmatprep.subr.mxu0 0.0
    %321 = vmatpush1.msra.mxu0 0.0
    %322 = vmatprep.subr.mxu0 0.0
    %323 = vmatpush1.msra.mxu0 0.0
    %324 = vmatprep.subr.mxu0 0.0
    %325 = vmatpush1.msra.mxu0 0.0
    %326 = vmatprep.subr.mxu0 0.0
    %327 = vmatpush1.msra.mxu0 0.0
    %328 = vmatprep.subr.mxu0 0.0
    %329 = vmatpush1.msra.mxu0 0.0
    %330 = vmatprep.subr.mxu0 0.0
    %331 = vmatpush1.msra.mxu0 0.0
    %332 = vmatprep.subr.mxu0 0.0
    %333 = vmatpush1.msra.mxu0 0.0
    %334 = vmatprep.subr.mxu0 0.0
    %335 = vmatpush1.msra.mxu0 0.0
    %336 = vmatprep.mubr.f32.mxu0 0.0
    %337 = vmatmul.mubr.f32.gmra.mrb[0].mxu0 %v248
    %v338 = vpop.f32.mrb[0].mxu0
    %v339 = vadd.f32 %v270, %v338
    %v340 = vpop.f32.mrb[0].mxu0
    %341 = vdwg.mxu0
    %342 = vst [vmem:[#allocation8] sm:$0xff] %v339
    // Predicated region
    $region42: #{mlp_forward.1} parent=1 // pred_check
      _
    $region43: #{mlp_forward.1} parent=1 // pred_check_branch
      %344 = sbr.rel (0) target = $region45
    $region44: #{mlp_forward.1} parent=1 // pred_region
      %s346 = ssub.s32 128, 32
      %347 = vsyncadd [#allocation4], %s346
      %s348 = sshll.u32 [#allocation8], 4
      %s349 = int_to_ptr.vmem [resolvable:$true] %s348
      %354 = dma.vmem_to_hbm [thread:$0]  %s349, 32, %s7, [#allocation4], 32, 32, 2
    $region45: #{mlp_forward.1} parent=1 // pred_fallthru
      _
    // Predicated region
    $region46: #{mlp_forward.1} parent=1 // pred_check
      _
    $region47: #{mlp_forward.1} parent=1 // pred_check_branch
      %356 = sbr.rel (0) target = $region49
    $region48: #{mlp_forward.1} parent=1 // pred_region
      %357 = dma.done [#allocation4], 128
    $region49: #{mlp_forward.1} parent=1 // pred_fallthru
      _
    %358 = vsyncpa [#allocation3], 1
    %359 = vsyncpa [#allocation6], 1
    %360 = vsyncpa [#allocation4], 1

</llo_original>
